<compile_context>
chip_gen: v6e
topology: v6e:2x2x1
jax: 0.10.0
libtpu: 0.0.40
codegen_flags: <defaults>
</compile_context>

<pallas_src>
import functools

import jax
import jax.numpy as jnp
import numpy as np
from jax.experimental import pallas as pl
from jax.experimental.pallas import tpu as pltpu


def _conv_block_kernel(x_ref, w1_ref, b1_ref, w2_ref, b2_ref, o_ref, *, H):
    """Fused (conv3x3 + BN + ReLU) x 2 on a row-packed tile of whole images.

    x_ref:  (TM, W*Cin_p)        bf16  lane-dense rows (TM = whole-images * H)
    w1_ref: (3, W*Cin_p, W*Cout) bf16  block-Toeplitz weights per kh tap (BN folded in)
    b1_ref: (1, W*Cout)          f32   folded conv-bias + BN shift, tiled over W
    w2_ref: (3, W*Cout, W*Cout)  bf16
    b2_ref: (1, W*Cout)          f32
    o_ref:  (TM, W*Cout)         bf16  lane-dense output tile
    """
    TM = x_ref.shape[0]
    # Row index within its image: tiles start on image boundaries and TM % H == 0,
    # so the boundary masks are the same simple periodic pattern for every grid step.
    row = jax.lax.broadcasted_iota(jnp.int32, (TM, 1), 0) % H
    has_above = row != 0        # row ho-1 exists inside the same image
    has_below = row != H - 1    # row ho+1 exists inside the same image

    def conv_bn_relu(xb, w_ref, b_ref):
        # Three independent tap matmuls (kh = 0, 1, 2).  The kw taps and the zero
        # padding along W live inside the block-Toeplitz weights, so each matmul is
        # a plain (TM, K) x (K, W*Cout) MXU op with no relayout work.
        p0 = jnp.dot(xb, w_ref[0], preferred_element_type=jnp.float32)
        p1 = jnp.dot(xb, w_ref[1], preferred_element_type=jnp.float32)
        p2 = jnp.dot(xb, w_ref[2], preferred_element_type=jnp.float32)
        # kh row shifts applied to the f32 *outputs*: sublane roll on the XLU plus a
        # boundary mask on the VPU.  y[ho] = p1[ho] + p0[ho-1] + p2[ho+1], with the
        # shifted terms zeroed at image boundaries (this is exactly "same" padding
        # along H and also stops rows leaking between packed images).
        acc = p1
        acc = acc + jnp.where(has_above, pltpu.roll(p0, shift=1, axis=0), 0.0)
        acc = acc + jnp.where(has_below, pltpu.roll(p2, shift=TM - 1, axis=0), 0.0)
        # Folded BatchNorm affine (per-lane bias row) + ReLU on the VPU.
        return jnp.maximum(acc + b_ref[...], 0.0)            # (TM, W*Cout) f32

    y1 = conv_bn_relu(x_ref[...], w1_ref, b1_ref)             # stays in VMEM / vregs
    y2 = conv_bn_relu(y1.astype(jnp.bfloat16), w2_ref, b2_ref)
    o_ref[...] = y2.astype(o_ref.dtype)


def _sel_const(W):
    # sel[kw, wi, wo] = 1 iff wi == wo + kw - 1 ; missing blocks realize W zero-padding.
    return np.stack([np.eye(W, W, k=1 - kw, dtype=np.float32) for kw in range(3)])


def _fold_layer(params, i, W, cin_pad, eps=1e-5):
    """Fold conv bias + eval-mode BN into (block-Toeplitz bf16 weights, f32 bias row)."""
    w = params[f"w{i}"]                                       # (3, 3, Cin, Cout) HWIO
    scale = params[f"gamma{i}"] * jax.lax.rsqrt(params[f"var{i}"] + eps)
    shift = params[f"beta{i}"] + scale * (params[f"b{i}"] - params[f"mean{i}"])
    w = w * scale                                             # BN scale folded into W
    Cin, Cout = w.shape[2], w.shape[3]
    if cin_pad > Cin:                                         # zero rows for padded Cin
        w = jnp.pad(w, ((0, 0), (0, 0), (0, cin_pad - Cin), (0, 0)))
    sel = _sel_const(W)                                       # (3, W, W) 0/1 constant
    wbig = jnp.einsum("xab,yxio->yaibo", sel, w)              # (3, W, Cin_p, W, Cout)
    wbig = wbig.reshape(3, W * cin_pad, W * Cout).astype(jnp.bfloat16)
    brow = jnp.tile(shift, W).reshape(1, W * Cout).astype(jnp.float32)
    return wbig, brow


def _pad_cin(Cin, W):
    # Pad Cin so the input lane dim W*Cin fills whole 128-lane vregs (when W | 128):
    # unmasked vld/vst layout and a full K=128 on the layer-1 matmuls.
    if 128 % W == 0:
        unit = 128 // W
        return ((Cin + unit - 1) // unit) * unit
    return Cin


def _row_tile(N, H, target_rows=256):
    """Rows per grid step: whole images, close to `target_rows` (M ~ 128/256 fills the
    MXU on v5e/v6e/v7x), and dividing N so every step is full."""
    imgs = max(1, min(N, max(1, target_rows // H)))
    while N % imgs:
        imgs -= 1
    return imgs * H


@jax.jit
def conv_block_forward(x_nchw, params):
    """Matches conv_block.forward (eval-mode BatchNorm).  NCHW in / NCHW out."""
    N, Cin, H, W = x_nchw.shape
    Cout = params["w0"].shape[-1]
    Cin_p = _pad_cin(Cin, W)

    # NCHW -> NHWC, zero-pad channels, pack rows -> lane-dense (N*H, W*Cin_p) bf16 slab.
    x = jnp.transpose(x_nchw, (0, 2, 3, 1))
    if Cin_p > Cin:
        x = jnp.pad(x, ((0, 0), (0, 0), (0, 0), (0, Cin_p - Cin)))
    x = x.reshape(N * H, W * Cin_p).astype(jnp.bfloat16)

    w1, b1 = _fold_layer(params, 0, W, Cin_p)
    w2, b2 = _fold_layer(params, 1, W, Cout)

    TM = _row_tile(N, H)                   # whole images per step, M = TM per matmul
    grid = ((N * H) // TM,)

    const = dict(pipeline_mode=pl.Buffered(1))   # grid-invariant operands: single-buffer
    out2d = pl.pallas_call(
        functools.partial(_conv_block_kernel, H=H),
        out_shape=jax.ShapeDtypeStruct((N * H, W * Cout), jnp.bfloat16),
        grid=grid,
        in_specs=[
            pl.BlockSpec((TM, W * Cin_p), lambda i: (i, 0)),
            pl.BlockSpec((3, W * Cin_p, W * Cout), lambda i: (0, 0, 0), **const),
            pl.BlockSpec((1, W * Cout), lambda i: (0, 0), **const),
            pl.BlockSpec((3, W * Cout, W * Cout), lambda i: (0, 0, 0), **const),
            pl.BlockSpec((1, W * Cout), lambda i: (0, 0), **const),
        ],
        out_specs=pl.BlockSpec((TM, W * Cout), lambda i: (i, 0)),
        compiler_params=pltpu.CompilerParams(
            dimension_semantics=("parallel",)),  # row-tiles can split across v7x's 2 TCs
    )(x, w1, b1, w2, b2)

    # bf16 kernel output halves HBM writeback + transpose bytes; restore f32 / NCHW here.
    out = out2d.reshape(N, H, W, Cout).astype(jnp.float32)
    return jnp.transpose(out, (0, 3, 1, 2))


def _fold_bn(conv_bias, gamma, beta, mean, var, eps=1e-5):
    scale = gamma / jnp.sqrt(var + eps)
    shift = beta + scale * (conv_bias - mean)
    return scale.reshape(1, -1), shift.reshape(1, -1)


def init_params(key, ch_in, ch_out):
    """Deterministic synthetic parameters (shapes match the PyTorch module)."""
    ks = jax.random.split(key, 12)

    def conv_w(k, cin, cout):  # HWIO
        return 0.1 * jax.random.normal(k, (3, 3, cin, cout), jnp.float32)

    params = {}
    for i, cin in enumerate([ch_in, ch_out]):
        off = i * 6
        params[f"w{i}"] = conv_w(ks[off + 0], cin, ch_out)
        params[f"b{i}"] = 0.1 * jax.random.normal(ks[off + 1], (ch_out,), jnp.float32)
        params[f"gamma{i}"] = 1.0 + 0.1 * jax.random.normal(ks[off + 2], (ch_out,), jnp.float32)
        params[f"beta{i}"] = 0.1 * jax.random.normal(ks[off + 3], (ch_out,), jnp.float32)
        params[f"mean{i}"] = 0.1 * jax.random.normal(ks[off + 4], (ch_out,), jnp.float32)
        params[f"var{i}"] = jax.random.uniform(ks[off + 5], (ch_out,), jnp.float32, 0.5, 1.5)
    return params


def reference_forward(x_nchw, params):
    """Pure-JAX f32 reference (lax conv) for a sanity check."""
    x = jnp.transpose(x_nchw, (0, 2, 3, 1))
    for i in range(2):
        y = jax.lax.conv_general_dilated(
            x, params[f"w{i}"], window_strides=(1, 1), padding="SAME",
            dimension_numbers=("NHWC", "HWIO", "NHWC"))
        scale, shift = _fold_bn(params[f"b{i}"], params[f"gamma{i}"],
                                params[f"beta{i}"], params[f"mean{i}"],
                                params[f"var{i}"])
        x = jnp.maximum(y * scale + shift, 0.0)
    return jnp.transpose(x, (0, 3, 1, 2))


if __name__ == "__main__":
    key = jax.random.PRNGKey(0)
    k_x, k_p = jax.random.split(key)

    N, CH_IN, CH_OUT, H, W = 2, 4, 8, 16, 16
    x = jax.random.normal(k_x, (N, CH_IN, H, W), jnp.float32)   # NCHW like PyTorch
    params = init_params(k_p, CH_IN, CH_OUT)

    out = jax.block_until_ready(conv_block_forward(x, params))
    assert out.shape == (N, CH_OUT, H, W), out.shape

    ref = jax.block_until_ready(reference_forward(x, params))
    out_np, ref_np = np.asarray(out), np.asarray(ref)
    # bf16 matmul inputs, bf16 intermediate activation and bf16 kernel output.
    if not np.allclose(out_np, ref_np, rtol=3e-2, atol=3e-2):
        raise AssertionError(
            f"Pallas conv_block does not match reference "
            f"(max abs err {np.max(np.abs(out_np - ref_np))})")

    print("KERNEL_OK")
</pallas_src>

<mosaic_0001>
module attributes {stable_mosaic.version = 11 : i64} {
  func.func @_conv_block_kernel(%arg0: i32, %arg1: memref<32x128xbf16, #tpu.memory_space<vmem>>, %arg2: memref<3x128x128xbf16, #tpu.memory_space<vmem>>, %arg3: memref<1x128xf32, #tpu.memory_space<vmem>>, %arg4: memref<3x128x128xbf16, #tpu.memory_space<vmem>>, %arg5: memref<1x128xf32, #tpu.memory_space<vmem>>, %arg6: memref<32x128xbf16, #tpu.memory_space<vmem>>) attributes {dimension_semantics = [#tpu.dimension_semantics<parallel>], iteration_bounds = array<i64: 1>, scalar_prefetch = 0 : i64, scratch_operands = 0 : i64, tpu.core_type = #tpu.core_type<tc>, window_params = [{transform_indices = @transform_0, window_bounds = array<i64: 32, 128>}, {pipeline_mode = #tpu.pipeline_mode<synchronous>, transform_indices = @transform_1, window_bounds = array<i64: 3, 128, 128>}, {pipeline_mode = #tpu.pipeline_mode<synchronous>, transform_indices = @transform_2, window_bounds = array<i64: 1, 128>}, {pipeline_mode = #tpu.pipeline_mode<synchronous>, transform_indices = @transform_3, window_bounds = array<i64: 3, 128, 128>}, {pipeline_mode = #tpu.pipeline_mode<synchronous>, transform_indices = @transform_4, window_bounds = array<i64: 1, 128>}, {transform_indices = @transform_5, window_bounds = array<i64: 32, 128>}]} {
    %0 = tpu.iota {dimensions = array<i32: 0>} : vector<32x1xi32>
    %c16_i32 = arith.constant 16 : i32
    %c0_i32 = arith.constant 0 : i32
    %1 = arith.cmpi eq, %c16_i32, %c0_i32 : i32
    %c1_i32 = arith.constant 1 : i32
    %2 = arith.select %1, %c1_i32, %c16_i32 : i32
    %3 = vector.broadcast %2 : i32 to vector<32x1xi32>
    %4 = arith.remsi %0, %3 : vector<32x1xi32>
    %c0_i32_0 = arith.constant 0 : i32
    %5 = vector.broadcast %c0_i32_0 : i32 to vector<32x1xi32>
    %6 = arith.cmpi ne, %4, %5 : vector<32x1xi32>
    %c0_i32_1 = arith.constant 0 : i32
    %7 = vector.broadcast %c0_i32_1 : i32 to vector<32x1xi32>
    %8 = arith.cmpi slt, %4, %7 : vector<32x1xi32>
    %c0_i32_2 = arith.constant 0 : i32
    %9 = arith.cmpi slt, %2, %c0_i32_2 : i32
    %10 = vector.broadcast %9 : i1 to vector<32x1xi1>
    %11 = vector.broadcast %10 : vector<32x1xi1> to vector<32x1xi1>
    %12 = arith.xori %8, %11 : vector<32x1xi1>
    %13 = arith.andi %12, %6 : vector<32x1xi1>
    %14 = vector.broadcast %2 : i32 to vector<32x1xi32>
    %15 = arith.addi %4, %14 : vector<32x1xi32>
    %16 = arith.select %13, %15, %4 : vector<32x1xi1>, vector<32x1xi32>
    %c0_i32_3 = arith.constant 0 : i32
    %17 = vector.broadcast %c0_i32_3 : i32 to vector<32x1xi32>
    %18 = arith.cmpi ne, %16, %17 : vector<32x1xi32>
    %c15_i32 = arith.constant 15 : i32
    %19 = vector.broadcast %c15_i32 : i32 to vector<32x1xi32>
    %20 = arith.cmpi ne, %16, %19 : vector<32x1xi32>
    %c0 = arith.constant 0 : index
    %c0_4 = arith.constant 0 : index
    %21 = vector.load %arg1[%c0, %c0_4] : memref<32x128xbf16, #tpu.memory_space<vmem>>, vector<32x128xbf16>
    %c0_5 = arith.constant 0 : index
    %c0_6 = arith.constant 0 : index
    %c0_7 = arith.constant 0 : index
    %22 = vector.load %arg2[%c0_5, %c0_6, %c0_7] : memref<3x128x128xbf16, #tpu.memory_space<vmem>>, vector<1x128x128xbf16>
    %23 = vector.shape_cast %22 : vector<1x128x128xbf16> to vector<128x128xbf16>
    %cst = arith.constant dense<0.000000e+00> : vector<32x128xf32>
    %24 = tpu.matmul %21, %23, %cst {dimension_numbers = #tpu.dot_dimension_numbers<[1], [0], [0], [1], [0, 0, 1, 1], [], []>} : vector<32x128xbf16>, vector<128x128xbf16>, vector<32x128xf32> -> vector<32x128xf32>
    %c1 = arith.constant 1 : index
    %c0_8 = arith.constant 0 : index
    %c0_9 = arith.constant 0 : index
    %25 = vector.load %arg2[%c1, %c0_8, %c0_9] : memref<3x128x128xbf16, #tpu.memory_space<vmem>>, vector<1x128x128xbf16>
    %26 = vector.shape_cast %25 : vector<1x128x128xbf16> to vector<128x128xbf16>
    %cst_10 = arith.constant dense<0.000000e+00> : vector<32x128xf32>
    %27 = tpu.matmul %21, %26, %cst_10 {dimension_numbers = #tpu.dot_dimension_numbers<[1], [0], [0], [1], [0, 0, 1, 1], [], []>} : vector<32x128xbf16>, vector<128x128xbf16>, vector<32x128xf32> -> vector<32x128xf32>
    %c2 = arith.constant 2 : index
    %c0_11 = arith.constant 0 : index
    %c0_12 = arith.constant 0 : index
    %28 = vector.load %arg2[%c2, %c0_11, %c0_12] : memref<3x128x128xbf16, #tpu.memory_space<vmem>>, vector<1x128x128xbf16>
    %29 = vector.shape_cast %28 : vector<1x128x128xbf16> to vector<128x128xbf16>
    %cst_13 = arith.constant dense<0.000000e+00> : vector<32x128xf32>
    %30 = tpu.matmul %21, %29, %cst_13 {dimension_numbers = #tpu.dot_dimension_numbers<[1], [0], [0], [1], [0, 0, 1, 1], [], []>} : vector<32x128xbf16>, vector<128x128xbf16>, vector<32x128xf32> -> vector<32x128xf32>
    %c1_i32_14 = arith.constant 1 : i32
    %31 = tpu.dynamic_rotate %24 by %c1_i32_14 dim 0 : vector<32x128xf32>, i32 -> vector<32x128xf32>
    %cst_15 = arith.constant 0.000000e+00 : f32
    %32 = vector.shape_cast %18 : vector<32x1xi1> to vector<32x1xi1>
    %33 = vector.broadcast %32 : vector<32x1xi1> to vector<32x128xi1>
    %34 = vector.broadcast %cst_15 : f32 to vector<32x128xf32>
    %35 = arith.select %33, %31, %34 : vector<32x128xi1>, vector<32x128xf32>
    %36 = arith.addf %27, %35 : vector<32x128xf32>
    %c31_i32 = arith.constant 31 : i32
    %37 = tpu.dynamic_rotate %30 by %c31_i32 dim 0 : vector<32x128xf32>, i32 -> vector<32x128xf32>
    %cst_16 = arith.constant 0.000000e+00 : f32
    %38 = vector.shape_cast %20 : vector<32x1xi1> to vector<32x1xi1>
    %39 = vector.broadcast %38 : vector<32x1xi1> to vector<32x128xi1>
    %40 = vector.broadcast %cst_16 : f32 to vector<32x128xf32>
    %41 = arith.select %39, %37, %40 : vector<32x128xi1>, vector<32x128xf32>
    %42 = arith.addf %36, %41 : vector<32x128xf32>
    %c0_17 = arith.constant 0 : index
    %c0_18 = arith.constant 0 : index
    %43 = vector.load %arg3[%c0_17, %c0_18] : memref<1x128xf32, #tpu.memory_space<vmem>>, vector<1x128xf32>
    %44 = vector.broadcast %43 : vector<1x128xf32> to vector<32x128xf32>
    %45 = arith.addf %42, %44 : vector<32x128xf32>
    %cst_19 = arith.constant 0.000000e+00 : f32
    %46 = vector.broadcast %cst_19 : f32 to vector<32x128xf32>
    %47 = arith.maximumf %45, %46 : vector<32x128xf32>
    %48 = arith.truncf %47 : vector<32x128xf32> to vector<32x128xbf16>
    %c0_20 = arith.constant 0 : index
    %c0_21 = arith.constant 0 : index
    %c0_22 = arith.constant 0 : index
    %49 = vector.load %arg4[%c0_20, %c0_21, %c0_22] : memref<3x128x128xbf16, #tpu.memory_space<vmem>>, vector<1x128x128xbf16>
    %50 = vector.shape_cast %49 : vector<1x128x128xbf16> to vector<128x128xbf16>
    %cst_23 = arith.constant dense<0.000000e+00> : vector<32x128xf32>
    %51 = tpu.matmul %48, %50, %cst_23 {dimension_numbers = #tpu.dot_dimension_numbers<[1], [0], [0], [1], [0, 0, 1, 1], [], []>} : vector<32x128xbf16>, vector<128x128xbf16>, vector<32x128xf32> -> vector<32x128xf32>
    %c1_24 = arith.constant 1 : index
    %c0_25 = arith.constant 0 : index
    %c0_26 = arith.constant 0 : index
    %52 = vector.load %arg4[%c1_24, %c0_25, %c0_26] : memref<3x128x128xbf16, #tpu.memory_space<vmem>>, vector<1x128x128xbf16>
    %53 = vector.shape_cast %52 : vector<1x128x128xbf16> to vector<128x128xbf16>
    %cst_27 = arith.constant dense<0.000000e+00> : vector<32x128xf32>
    %54 = tpu.matmul %48, %53, %cst_27 {dimension_numbers = #tpu.dot_dimension_numbers<[1], [0], [0], [1], [0, 0, 1, 1], [], []>} : vector<32x128xbf16>, vector<128x128xbf16>, vector<32x128xf32> -> vector<32x128xf32>
    %c2_28 = arith.constant 2 : index
    %c0_29 = arith.constant 0 : index
    %c0_30 = arith.constant 0 : index
    %55 = vector.load %arg4[%c2_28, %c0_29, %c0_30] : memref<3x128x128xbf16, #tpu.memory_space<vmem>>, vector<1x128x128xbf16>
    %56 = vector.shape_cast %55 : vector<1x128x128xbf16> to vector<128x128xbf16>
    %cst_31 = arith.constant dense<0.000000e+00> : vector<32x128xf32>
    %57 = tpu.matmul %48, %56, %cst_31 {dimension_numbers = #tpu.dot_dimension_numbers<[1], [0], [0], [1], [0, 0, 1, 1], [], []>} : vector<32x128xbf16>, vector<128x128xbf16>, vector<32x128xf32> -> vector<32x128xf32>
    %c1_i32_32 = arith.constant 1 : i32
    %58 = tpu.dynamic_rotate %51 by %c1_i32_32 dim 0 : vector<32x128xf32>, i32 -> vector<32x128xf32>
    %cst_33 = arith.constant 0.000000e+00 : f32
    %59 = vector.shape_cast %18 : vector<32x1xi1> to vector<32x1xi1>
    %60 = vector.broadcast %59 : vector<32x1xi1> to vector<32x128xi1>
    %61 = vector.broadcast %cst_33 : f32 to vector<32x128xf32>
    %62 = arith.select %60, %58, %61 : vector<32x128xi1>, vector<32x128xf32>
    %63 = arith.addf %54, %62 : vector<32x128xf32>
    %c31_i32_34 = arith.constant 31 : i32
    %64 = tpu.dynamic_rotate %57 by %c31_i32_34 dim 0 : vector<32x128xf32>, i32 -> vector<32x128xf32>
    %cst_35 = arith.constant 0.000000e+00 : f32
    %65 = vector.shape_cast %20 : vector<32x1xi1> to vector<32x1xi1>
    %66 = vector.broadcast %65 : vector<32x1xi1> to vector<32x128xi1>
    %67 = vector.broadcast %cst_35 : f32 to vector<32x128xf32>
    %68 = arith.select %66, %64, %67 : vector<32x128xi1>, vector<32x128xf32>
    %69 = arith.addf %63, %68 : vector<32x128xf32>
    %c0_36 = arith.constant 0 : index
    %c0_37 = arith.constant 0 : index
    %70 = vector.load %arg5[%c0_36, %c0_37] : memref<1x128xf32, #tpu.memory_space<vmem>>, vector<1x128xf32>
    %71 = vector.broadcast %70 : vector<1x128xf32> to vector<32x128xf32>
    %72 = arith.addf %69, %71 : vector<32x128xf32>
    %cst_38 = arith.constant 0.000000e+00 : f32
    %73 = vector.broadcast %cst_38 : f32 to vector<32x128xf32>
    %74 = arith.maximumf %72, %73 : vector<32x128xf32>
    %75 = arith.truncf %74 : vector<32x128xf32> to vector<32x128xbf16>
    %c0_39 = arith.constant 0 : index
    %c0_40 = arith.constant 0 : index
    %76 = vector.load %arg6[%c0_39, %c0_40] : memref<32x128xbf16, #tpu.memory_space<vmem>>, vector<32x128xbf16>
    tpu.vector_store %arg6[%c0_39, %c0_40], %75 {strides = array<i32>} : memref<32x128xbf16, #tpu.memory_space<vmem>>, vector<32x128xbf16>,
    return
  }
  func.func @transform_0(%arg0: i32) -> (i32, i32) {
    %c0_i32 = arith.constant 0 : i32
    %c0_i32_0 = arith.constant 0 : i32
    return %arg0, %c0_i32 : i32, i32
  }
  func.func @transform_1(%arg0: i32) -> (i32, i32, i32) {
    %c0_i32 = arith.constant 0 : i32
    %c0_i32_0 = arith.constant 0 : i32
    %c0_i32_1 = arith.constant 0 : i32
    %c0_i32_2 = arith.constant 0 : i32
    return %c0_i32, %c0_i32_0, %c0_i32_1 : i32, i32, i32
  }
  func.func @transform_2(%arg0: i32) -> (i32, i32) {
    %c0_i32 = arith.constant 0 : i32
    %c0_i32_0 = arith.constant 0 : i32
    %c0_i32_1 = arith.constant 0 : i32
    return %c0_i32, %c0_i32_0 : i32, i32
  }
  func.func @transform_3(%arg0: i32) -> (i32, i32, i32) {
    %c0_i32 = arith.constant 0 : i32
    %c0_i32_0 = arith.constant 0 : i32
    %c0_i32_1 = arith.constant 0 : i32
    %c0_i32_2 = arith.constant 0 : i32
    return %c0_i32, %c0_i32_0, %c0_i32_1 : i32, i32, i32
  }
  func.func @transform_4(%arg0: i32) -> (i32, i32) {
    %c0_i32 = arith.constant 0 : i32
    %c0_i32_0 = arith.constant 0 : i32
    %c0_i32_1 = arith.constant 0 : i32
    return %c0_i32, %c0_i32_0 : i32, i32
  }
  func.func @transform_5(%arg0: i32) -> (i32, i32) {
    %c0_i32 = arith.constant 0 : i32
    %c0_i32_0 = arith.constant 0 : i32
    return %arg0, %c0_i32 : i32, i32
  }
}

</mosaic_0001>

<llo_original>
// kernel: tile.13
$region0: #{tile.13}
  #allocation0 [shape = 's32[1]{0}', space=sflag, size = 0x4, scoped, tag = 'scoped memory for tile.13']
  %s0 = inlined_call_operand.vmem [shape: f32[8], index: 0, kind: input, shape index: {}]
  %s1 = inlined_call_operand.vmem [shape: f32[16,8], index: 1, kind: output, shape index: {}]
  // Predicated region
  $region2: #{tile.13} parent=0 // pred_check
    _
  $region3: #{tile.13} parent=0 // pred_check_branch
    %3 = sbr.rel (0) target = $region5
  $region4: #{tile.13} parent=0 // pred_region
    _
  $region5: #{tile.13} parent=0 // pred_fallthru
    _
  %v4 = vld [vmem:[%s0] ss:$0 sm:$0xff]
  %5 = vst [vmem:[%s1] sm:$0xff] %v4
  %s6 = scalar_lea.vmem %s1, 8
  %7 = vst [vmem:[%s6] sm:$0xff] %v4

// kernel: tile.14
$region0: #{tile.14}
  %s0 = inlined_call_operand.vmem [shape: f32[16,8], index: 0, kind: input, shape index: {}]
  %s1 = inlined_call_operand.vmem [shape: f32[1,128], index: 1, kind: output, shape index: {}]
  $region1: #{tile.14} parent=0
    #allocation0 [shape = 'u8[4096]{0}', space=vmem, size = 0x1000, scoped, tag = 'scoped mem for output reshape']
    %v2 = vld [vmem:[%s0] sm:$0x1]
    %vm3 = vcmask 64512
    %4 = vst.msk [vmem:[#allocation0] sm:$0x1] %vm3, %v2
    %s5 = scalar_lea.vmem %s0, 15
    %v6 = vld [vmem:[%s5] sm:$0x1]
    %7 = vrot.lane.b32.xlu0 %v6, 120
    %v8 = vpop.permute.xlu0 %7
    %vm9 = vcmask 1048512
    %10 = vst.msk [vmem:[#allocation0] sm:$0x1] %vm9, %v8
    %s11 = scalar_lea.vmem %s0, 14
    %v12 = vld [vmem:[%s11] sm:$0x1]
    %13 = vrot.lane.b32.xlu0 %v12, 112
    %v14 = vpop.permute.xlu0 %13
    %vm15 = vcmask 982912
    %16 = vst.msk [vmem:[#allocation0] sm:$0x1] %vm15, %v14
    %s17 = scalar_lea.vmem %s0, 13
    %v18 = vld [vmem:[%s17] sm:$0x1]
    %19 = vrot.lane.b32.xlu0 %v18, 104
    %v20 = vpop.permute.xlu0 %19
    %vm21 = vcmask 917312
    %22 = vst.msk [vmem:[#allocation0] sm:$0x1] %vm21, %v20
    %s23 = scalar_lea.vmem %s0, 12
    %v24 = vld [vmem:[%s23] sm:$0x1]
    %25 = vrot.lane.b32.xlu0 %v24, 96
    %v26 = vpop.permute.xlu0 %25
    %vm27 = vcmask 851712
    %28 = vst.msk [vmem:[#allocation0] sm:$0x1] %vm27, %v26
    %s29 = scalar_lea.vmem %s0, 11
    %v30 = vld [vmem:[%s29] sm:$0x1]
    %31 = vrot.lane.b32.xlu0 %v30, 88
    %v32 = vpop.permute.xlu0 %31
    %vm33 = vcmask 786112
    %34 = vst.msk [vmem:[#allocation0] sm:$0x1] %vm33, %v32
    %s35 = scalar_lea.vmem %s0, 10
    %v36 = vld [vmem:[%s35] sm:$0x1]
    %37 = vrot.lane.b32.xlu0 %v36, 80
    %v38 = vpop.permute.xlu0 %37
    %vm39 = vcmask 720512
    %40 = vst.msk [vmem:[#allocation0] sm:$0x1] %vm39, %v38
    %s41 = scalar_lea.vmem %s0, 9
    %v42 = vld [vmem:[%s41] sm:$0x1]
    %43 = vrot.lane.b32.xlu0 %v42, 72
    %v44 = vpop.permute.xlu0 %43
    %vm45 = vcmask 654912
    %46 = vst.msk [vmem:[#allocation0] sm:$0x1] %vm45, %v44
    %s47 = scalar_lea.vmem %s0, 8
    %v48 = vld [vmem:[%s47] sm:$0x1]
    %49 = vrot.lane.b32.xlu0 %v48, 64
    %v50 = vpop.permute.xlu0 %49
    %vm51 = vcmask 589312
    %52 = vst.msk [vmem:[#allocation0] sm:$0x1] %vm51, %v50
    %s53 = scalar_lea.vmem %s0, 7
    %v54 = vld [vmem:[%s53] sm:$0x1]
    %55 = vrot.lane.b32.xlu0 %v54, 56
    %v56 = vpop.permute.xlu0 %55
    %vm57 = vcmask 523712
    %58 = vst.msk [vmem:[#allocation0] sm:$0x1] %vm57, %v56
    %s59 = scalar_lea.vmem %s0, 6
    %v60 = vld [vmem:[%s59] sm:$0x1]
    %61 = vrot.lane.b32.xlu0 %v60, 48
    %v62 = vpop.permute.xlu0 %61
    %vm63 = vcmask 458112
    %64 = vst.msk [vmem:[#allocation0] sm:$0x1] %vm63, %v62
    %s65 = scalar_lea.vmem %s0, 5
    %v66 = vld [vmem:[%s65] sm:$0x1]
    %67 = vrot.lane.b32.xlu0 %v66, 40
    %v68 = vpop.permute.xlu0 %67
    %vm69 = vcmask 392512
    %70 = vst.msk [vmem:[#allocation0] sm:$0x1] %vm69, %v68
    %s71 = scalar_lea.vmem %s0, 4
    %v72 = vld [vmem:[%s71] sm:$0x1]
    %73 = vrot.lane.b32.xlu0 %v72, 32
    %v74 = vpop.permute.xlu0 %73
    %vm75 = vcmask 326912
    %76 = vst.msk [vmem:[#allocation0] sm:$0x1] %vm75, %v74
    %s77 = scalar_lea.vmem %s0, 3
    %v78 = vld [vmem:[%s77] sm:$0x1]
    %79 = vrot.lane.b32.xlu0 %v78, 24
    %v80 = vpop.permute.xlu0 %79
    %vm81 = vcmask 261312
    %82 = vst.msk [vmem:[#allocation0] sm:$0x1] %vm81, %v80
    %s83 = scalar_lea.vmem %s0, 2
    %v84 = vld [vmem:[%s83] sm:$0x1]
    %85 = vrot.lane.b32.xlu0 %v84, 16
    %v86 = vpop.permute.xlu0 %85
    %vm87 = vcmask 195712
    %88 = vst.msk [vmem:[#allocation0] sm:$0x1] %vm87, %v86
    %s89 = scalar_lea.vmem %s0, 1
    %v90 = vld [vmem:[%s89] sm:$0x1]
    %91 = vrot.lane.b32.xlu0 %v90, 8
    %v92 = vpop.permute.xlu0 %91
    %vm93 = vcmask 130112
    %94 = vst.msk [vmem:[#allocation0] sm:$0x1] %vm93, %v92
    %s96 = sshll.u32 1, 1
    %s97 = ssub.s32 %s96, 1
    %v99 = vld [vmem:[#allocation0] sm:%s97]
    %s100 = sshll.u32 1, 1
    %s101 = ssub.s32 %s100, 1
    %102 = vst [vmem:[%s1] sm:%s101] %v99

// kernel: conv_block_forward.1
$region0: #{conv_block_forward.1}
  #allocation0 [shape = 'u32[]', space=smem, size = 0x4, offset = 0x4, fixed_abs, tag = 'smem constant byte address 0x4 - core index']
  #allocation1 [shape = 'u32[144,128]{1,0:T(1,128)}', space=vmem, size = 0x12000, scoped, tag = 'internal scratch']
  %s0 = inlined_call_operand.vmem [shape: bf16[32,128], index: 0, kind: input, shape index: {}]
  %s1 = inlined_call_operand.vmem [shape: bf16[3,128,128], index: 1, kind: input, shape index: {}]
  %s2 = inlined_call_operand.vmem [shape: f32[1,128], index: 2, kind: input, shape index: {}]
  %s3 = inlined_call_operand.vmem [shape: bf16[3,128,128], index: 3, kind: input, shape index: {}]
  %s4 = inlined_call_operand.vmem [shape: f32[1,128], index: 4, kind: input, shape index: {}]
  %s5 = inlined_call_operand.vmem [shape: bf16[32,128], index: 5, kind: output, shape index: {}]
  %s6 = sld [smem:[#allocation0]]
  $region30: #{conv_block_forward.1} parent=0
    _
  %s8 = ssub.s32 1, %s6
  %s9 = scalar_select 0, %s8, %s6
  // Predicated region
  $region2: #{conv_block_forward.1} parent=0 // pred_check
    _
  $region3: #{conv_block_forward.1} parent=0 // pred_check_branch
    %11 = sbr.rel (0) target = $region5
  $region4: #{conv_block_forward.1} parent=0 // pred_region
    _
  $region5: #{conv_block_forward.1} parent=0 // pred_fallthru
    _
  // Predicated region
  $region6: #{conv_block_forward.1} parent=0 // pred_check
    _
  $region7: #{conv_block_forward.1} parent=0 // pred_check_branch
    %13 = sbr.rel (0) target = $region9
  $region8: #{conv_block_forward.1} parent=0 // pred_region
    _
  $region9: #{conv_block_forward.1} parent=0 // pred_fallthru
    _
  // Predicated region
  $region10: #{conv_block_forward.1} parent=0 // pred_check
    _
  $region11: #{conv_block_forward.1} parent=0 // pred_check_branch
    %15 = sbr.rel (0) target = $region13
  $region12: #{conv_block_forward.1} parent=0 // pred_region
    _
  $region13: #{conv_block_forward.1} parent=0 // pred_fallthru
    _
  // Predicated region
  $region14: #{conv_block_forward.1} parent=0 // pred_check
    _
  $region15: #{conv_block_forward.1} parent=0 // pred_check_branch
    %17 = sbr.rel (0) target = $region17
  $region16: #{conv_block_forward.1} parent=0 // pred_region
    _
  $region17: #{conv_block_forward.1} parent=0 // pred_fallthru
    _
  // Predicated region
  $region18: #{conv_block_forward.1} parent=0 // pred_check
    _
  $region19: #{conv_block_forward.1} parent=0 // pred_check_branch
    %19 = sbr.rel (0) target = $region21
  $region20: #{conv_block_forward.1} parent=0 // pred_region
    _
  $region21: #{conv_block_forward.1} parent=0 // pred_fallthru
    _
  %v21 = vlaneseq
  %v22 = vshrl.u32 %v21, 7
  %v23 = vadd.s32 %v22, 8
  %v24 = vadd.s32 %v22, 16
  %v25 = vadd.s32 %v22, 24
  %vm26 = vcmp.lt.s32.totalorder %v22, 0
  %v27 = vsub.s32 0, %v22
  %v28 = vsel %vm26, %v27, %v22
  %v29 = vshrl.u32 %v28, 4
  %v30 = vand.u32 %v28, 15
  %v31 = vsub.s32 0, %v30
  %v32 = vsel %vm26, %v31, %v30
  %vm33 = vcmp.lt.s32.totalorder %v23, 0
  %v34 = vsub.s32 0, %v23
  %v35 = vsel %vm33, %v34, %v23
  %v36 = vshrl.u32 %v35, 4
  %v37 = vand.u32 %v35, 15
  %v38 = vsub.s32 0, %v37
  %v39 = vsel %vm33, %v38, %v37
  %vm40 = vcmp.lt.s32.totalorder %v24, 0
  %v41 = vsub.s32 0, %v24
  %v42 = vsel %vm40, %v41, %v24
  %v43 = vshrl.u32 %v42, 4
  %v44 = vand.u32 %v42, 15
  %v45 = vsub.s32 0, %v44
  %v46 = vsel %vm40, %v45, %v44
  %vm47 = vcmp.lt.s32.totalorder %v25, 0
  %v48 = vsub.s32 0, %v25
  %v49 = vsel %vm47, %v48, %v25
  %v50 = vshrl.u32 %v49, 4
  %v51 = vand.u32 %v49, 15
  %v52 = vsub.s32 0, %v51
  %v53 = vsel %vm47, %v52, %v51
  %vm54 = vcmp.ne.s32.totalorder %v32, 0
  %vm55 = vcmp.ne.s32.totalorder %v39, 0
  %vm56 = vcmp.ne.s32.totalorder %v46, 0
  %vm57 = vcmp.ne.s32.totalorder %v53, 0
  %vm58 = vcmp.lt.s32.totalorder %v32, 0
  %vm59 = vcmp.lt.s32.totalorder %v39, 0
  %vm60 = vcmp.lt.s32.totalorder %v46, 0
  %vm61 = vcmp.lt.s32.totalorder %v53, 0
  %vm62 = vmand %vm58, %vm54
  %vm63 = vmand %vm59, %vm55
  %vm64 = vmand %vm60, %vm56
  %vm65 = vmand %vm61, %vm57
  %v66 = vadd.s32 %v32, 16
  %v67 = vadd.s32 %v39, 16
  %v68 = vadd.s32 %v46, 16
  %v69 = vadd.s32 %v53, 16
  %v70 = vsel %vm62, %v66, %v32
  %v71 = vsel %vm63, %v67, %v39
  %v72 = vsel %vm64, %v68, %v46
  %v73 = vsel %vm65, %v69, %v53
  %vm74 = vcmp.ne.s32.totalorder %v70, 0
  %vm75 = vcmp.ne.s32.totalorder %v71, 0
  %vm76 = vcmp.ne.s32.totalorder %v72, 0
  %vm77 = vcmp.ne.s32.totalorder %v73, 0
  %vm78 = vcmp.ne.s32.totalorder %v70, 15
  %vm79 = vcmp.ne.s32.totalorder %v71, 15
  %vm80 = vcmp.ne.s32.totalorder %v72, 15
  %vm81 = vcmp.ne.s32.totalorder %v73, 15
  %v82 = vld [vmem:[%s0] sm:$0xf]
  %v83 = vld [vmem:[%s0 + $0x4] sm:$0xf]
  %v84 = vld [vmem:[%s0 + $0x8] sm:$0xf]
  %v85 = vld [vmem:[%s0 + $0xc] sm:$0xf]
  %v86 = vld [vmem:[%s1] sm:$0xf]
  %v87 = vld [vmem:[%s1 + $0x4] sm:$0xf]
  %v88 = vld [vmem:[%s1 + $0x8] sm:$0xf]
  %v89 = vld [vmem:[%s1 + $0xc] sm:$0xf]
  %v90 = vld [vmem:[%s1 + $0x10] sm:$0xf]
  %v91 = vld [vmem:[%s1 + $0x14] sm:$0xf]
  %v92 = vld [vmem:[%s1 + $0x18] sm:$0xf]
  %v93 = vld [vmem:[%s1 + $0x1c] sm:$0xf]
  %v94 = vld [vmem:[%s1 + $0x20] sm:$0xf]
  %v95 = vld [vmem:[%s1 + $0x24] sm:$0xf]
  %v96 = vld [vmem:[%s1 + $0x28] sm:$0xf]
  %v97 = vld [vmem:[%s1 + $0x2c] sm:$0xf]
  %v98 = vld [vmem:[%s1 + $0x30] sm:$0xf]
  %v99 = vld [vmem:[%s1 + $0x34] sm:$0xf]
  %v100 = vld [vmem:[%s1 + $0x38] sm:$0xf]
  %v101 = vld [vmem:[%s1 + $0x3c] sm:$0xf]
  %v106 = vunpack.c.l.b16 %v82
  %v107 = vunpack.c.l.b16 %v83
  %v108 = vunpack.c.l.b16 %v84
  %v109 = vunpack.c.l.b16 %v85
  %v110 = vpack.c.b16 %v107, %v106
  %v111 = vpack.c.b16 %v109, %v108
  %v130 = vunpack.c.l.b16 %v86
  %v131 = vunpack.c.l.b16 %v87
  %v132 = vunpack.c.l.b16 %v88
  %v133 = vunpack.c.l.b16 %v89
  %v134 = vunpack.c.l.b16 %v90
  %v135 = vunpack.c.l.b16 %v91
  %v136 = vunpack.c.l.b16 %v92
  %v137 = vunpack.c.l.b16 %v93
  %v138 = vunpack.c.l.b16 %v94
  %v139 = vunpack.c.l.b16 %v95
  %v140 = vunpack.c.l.b16 %v96
  %v141 = vunpack.c.l.b16 %v97
  %v142 = vunpack.c.l.b16 %v98
  %v143 = vunpack.c.l.b16 %v99
  %v144 = vunpack.c.l.b16 %v100
  %v145 = vunpack.c.l.b16 %v101
  %v146 = vpack.c.b16 %v131, %v130
  %v147 = vpack.c.b16 %v133, %v132
  %v148 = vpack.c.b16 %v135, %v134
  %v149 = vpack.c.b16 %v137, %v136
  %v150 = vpack.c.b16 %v139, %v138
  %v151 = vpack.c.b16 %v141, %v140
  %v152 = vpack.c.b16 %v143, %v142
  %v153 = vpack.c.b16 %v145, %v144
  %162 = vmatprep.subr.bf16.mxu0 0
  %163 = vmatpush1.bf16.msra.mxu0 %v153
  %164 = vmatprep.subr.bf16.mxu0 0
  %165 = vmatpush1.bf16.msra.mxu0 %v152
  %166 = vmatprep.subr.bf16.mxu0 0
  %167 = vmatpush1.bf16.msra.mxu0 %v151
  %168 = vmatprep.subr.bf16.mxu0 0
  %169 = vmatpush1.bf16.msra.mxu0 %v150
  %170 = vmatprep.subr.bf16.mxu0 0
  %171 = vmatpush1.bf16.msra.mxu0 %v149
  %172 = vmatprep.subr.bf16.mxu0 0
  %173 = vmatpush1.bf16.msra.mxu0 %v148
  %174 = vmatprep.subr.bf16.mxu0 0
  %175 = vmatpush1.bf16.msra.mxu0 %v147
  %176 = vmatprep.subr.bf16.mxu0 0
  %177 = vmatpush1.bf16.msra.mxu0 %v146
  %178 = vmatprep.subr.bf16.mxu0 0
  %179 = vmatpush2.bf16.msra.mxu0 0
  %180 = vmatprep.subr.bf16.mxu0 0
  %181 = vmatpush2.bf16.msra.mxu0 0
  %182 = vmatprep.subr.bf16.mxu0 0
  %183 = vmatpush2.bf16.msra.mxu0 0
  %184 = vmatprep.subr.bf16.mxu0 0
  %185 = vmatpush2.bf16.msra.mxu0 0
  %186 = vmatprep.subr.bf16.mxu0 0
  %187 = vmatpush2.bf16.msra.mxu0 0
  %188 = vmatprep.subr.bf16.mxu0 0
  %189 = vmatpush2.bf16.msra.mxu0 0
  %190 = vmatprep.subr.bf16.mxu0 0
  %191 = vmatpush2.bf16.msra.mxu0 0
  %192 = vmatprep.subr.bf16.mxu0 0
  %193 = vmatpush2.bf16.msra.mxu0 0
  %194 = vmatprep.mubr.bf16.mxu0 0
  %195 = vmatmul.mubr.bf16.gmra.mxu0 %v110
  %v196 = vpop.f32.mrf.mxu0
  %v197 = vadd.f32 0.0, %v196
  %v198 = vpop.f32.mrf.mxu0
  %v199 = vpop.f32.mrf.mxu0
  %v200 = vadd.f32 0.0, %v199
  %v201 = vpop.f32.mrf.mxu0
  %202 = vmatprep.mubr.bf16.mxu0 0
  %203 = vmatmul.mubr.bf16.gmra.mxu0 %v111
  %v204 = vpop.f32.mrf.mxu0
  %v205 = vadd.f32 0.0, %v204
  %v206 = vpop.f32.mrf.mxu0
  %v207 = vpop.f32.mrf.mxu0
  %v208 = vadd.f32 0.0, %v207
  %v209 = vpop.f32.mrf.mxu0
  %210 = vdwg.mxu0
  %s211 = scalar_lea.vmem %s1, 64
  %v212 = vld [vmem:[%s211] sm:$0xf]
  %v213 = vld [vmem:[%s211 + $0x4] sm:$0xf]
  %v214 = vld [vmem:[%s211 + $0x8] sm:$0xf]
  %v215 = vld [vmem:[%s211 + $0xc] sm:$0xf]
  %v216 = vld [vmem:[%s211 + $0x10] sm:$0xf]
  %v217 = vld [vmem:[%s211 + $0x14] sm:$0xf]
  %v218 = vld [vmem:[%s211 + $0x18] sm:$0xf]
  %v219 = vld [vmem:[%s211 + $0x1c] sm:$0xf]
  %v220 = vld [vmem:[%s211 + $0x20] sm:$0xf]
  %v221 = vld [vmem:[%s211 + $0x24] sm:$0xf]
  %v222 = vld [vmem:[%s211 + $0x28] sm:$0xf]
  %v223 = vld [vmem:[%s211 + $0x2c] sm:$0xf]
  %v224 = vld [vmem:[%s211 + $0x30] sm:$0xf]
  %v225 = vld [vmem:[%s211 + $0x34] sm:$0xf]
  %v226 = vld [vmem:[%s211 + $0x38] sm:$0xf]
  %v227 = vld [vmem:[%s211 + $0x3c] sm:$0xf]
  %s228 = scalar_lea.vmem %s1, 128
  %v229 = vld [vmem:[%s228] sm:$0xf]
  %v230 = vld [vmem:[%s228 + $0x4] sm:$0xf]
  %v231 = vld [vmem:[%s228 + $0x8] sm:$0xf]
  %v232 = vld [vmem:[%s228 + $0xc] sm:$0xf]
  %v233 = vld [vmem:[%s228 + $0x10] sm:$0xf]
  %v234 = vld [vmem:[%s228 + $0x14] sm:$0xf]
  %v235 = vld [vmem:[%s228 + $0x18] sm:$0xf]
  %v236 = vld [vmem:[%s228 + $0x1c] sm:$0xf]
  %v237 = vld [vmem:[%s228 + $0x20] sm:$0xf]
  %v238 = vld [vmem:[%s228 + $0x24] sm:$0xf]
  %v239 = vld [vmem:[%s228 + $0x28] sm:$0xf]
  %v240 = vld [vmem:[%s228 + $0x2c] sm:$0xf]
  %v241 = vld [vmem:[%s228 + $0x30] sm:$0xf]
  %v242 = vld [vmem:[%s228 + $0x34] sm:$0xf]
  %v243 = vld [vmem:[%s228 + $0x38] sm:$0xf]
  %v244 = vld [vmem:[%s228 + $0x3c] sm:$0xf]
  %v261 = vunpack.c.l.b16 %v229
  %v262 = vunpack.c.l.b16 %v230
  %v263 = vunpack.c.l.b16 %v231
  %v264 = vunpack.c.l.b16 %v232
  %v265 = vunpack.c.l.b16 %v233
  %v266 = vunpack.c.l.b16 %v234
  %v267 = vunpack.c.l.b16 %v235
  %v268 = vunpack.c.l.b16 %v236
  %v269 = vunpack.c.l.b16 %v237
  %v270 = vunpack.c.l.b16 %v238
  %v271 = vunpack.c.l.b16 %v239
  %v272 = vunpack.c.l.b16 %v240
  %v273 = vunpack.c.l.b16 %v241
  %v274 = vunpack.c.l.b16 %v242
  %v275 = vunpack.c.l.b16 %v243
  %v276 = vunpack.c.l.b16 %v244
  %v277 = vpack.c.b16 %v262, %v261
  %v278 = vpack.c.b16 %v264, %v263
  %v279 = vpack.c.b16 %v266, %v265
  %v280 = vpack.c.b16 %v268, %v267
  %v281 = vpack.c.b16 %v270, %v269
  %v282 = vpack.c.b16 %v272, %v271
  %v283 = vpack.c.b16 %v274, %v273
  %v284 = vpack.c.b16 %v276, %v275
  %293 = vmatprep.subr.bf16.mxu0 0
  %294 = vmatpush1.bf16.msra.mxu0 %v284
  %295 = vmatprep.subr.bf16.mxu0 0
  %296 = vmatpush1.bf16.msra.mxu0 %v283
  %297 = vmatprep.subr.bf16.mxu0 0
  %298 = vmatpush1.bf16.msra.mxu0 %v282
  %299 = vmatprep.subr.bf16.mxu0 0
  %300 = vmatpush1.bf16.msra.mxu0 %v281
  %301 = vmatprep.subr.bf16.mxu0 0
  %302 = vmatpush1.bf16.msra.mxu0 %v280
  %303 = vmatprep.subr.bf16.mxu0 0
  %304 = vmatpush1.bf16.msra.mxu0 %v279
  %305 = vmatprep.subr.bf16.mxu0 0
  %306 = vmatpush1.bf16.msra.mxu0 %v278
  %307 = vmatprep.subr.bf16.mxu0 0
  %308 = vmatpush1.bf16.msra.mxu0 %v277
  %309 = vmatprep.subr.bf16.mxu0 0
  %310 = vmatpush2.bf16.msra.mxu0 0
  %311 = vmatprep.subr.bf16.mxu0 0
  %312 = vmatpush2.bf16.msra.mxu0 0
  %313 = vmatprep.subr.bf16.mxu0 0
  %314 = vmatpush2.bf16.msra.mxu0 0
  %315 = vmatprep.subr.bf16.mxu0 0
  %316 = vmatpush2.bf16.msra.mxu0 0
  %317 = vmatprep.subr.bf16.mxu0 0
  %318 = vmatpush2.bf16.msra.mxu0 0
  %319 = vmatprep.subr.bf16.mxu0 0
  %320 = vmatpush2.bf16.msra.mxu0 0
  %321 = vmatprep.subr.bf16.mxu0 0
  %322 = vmatpush2.bf16.msra.mxu0 0
  %323 = vmatprep.subr.bf16.mxu0 0
  %324 = vmatpush2.bf16.msra.mxu0 0
  %325 = vmatprep.mubr.bf16.mxu0 0
  %326 = vmatmul.mubr.bf16.gmra.mxu0 %v110
  %v327 = vpop.f32.mrf.mxu0
  %v328 = vadd.f32 0.0, %v327
  %v329 = vpop.f32.mrf.mxu0
  %v330 = vpop.f32.mrf.mxu0
  %v331 = vadd.f32 0.0, %v330
  %v332 = vpop.f32.mrf.mxu0
  %333 = vmatprep.mubr.bf16.mxu0 0
  %334 = vmatmul.mubr.bf16.gmra.mxu0 %v111
  %v335 = vpop.f32.mrf.mxu0
  %v336 = vadd.f32 0.0, %v335
  %v337 = vpop.f32.mrf.mxu0
  %v338 = vpop.f32.mrf.mxu0
  %v339 = vadd.f32 0.0, %v338
  %v340 = vpop.f32.mrf.mxu0
  %341 = vdwg.mxu0
  %v342 = vrot.slane %v197, 7
  %v343 = vrot.slane %v200, 7
  %v344 = vrot.slane %v205, 7
  %v345 = vrot.slane %v208, 7
  %vm346 = vcmp.lt.s32.totalorder %v22, 1
  %v347 = vsel %vm346, %v344, %v345
  %v348 = vsel %vm346, %v343, %v344
  %v349 = vsel %vm346, %v342, %v343
  %v350 = vsel %vm346, %v345, %v342
  %v351 = vsel %vm74, 1, 0
  %v352 = vsel %vm75, 1, 0
  %v353 = vsel %vm76, 1, 0
  %v354 = vsel %vm77, 1, 0
  %vm355 = vcmp.eq.s32.totalorder %v351, 1
  %vm356 = vcmp.eq.s32.totalorder %v352, 1
  %vm357 = vcmp.eq.s32.totalorder %v353, 1
  %vm358 = vcmp.eq.s32.totalorder %v354, 1
  %v359 = vsel %vm355, %v350, 0.0
  %v360 = vsel %vm356, %v349, 0.0
  %v361 = vsel %vm357, %v348, 0.0
  %v362 = vsel %vm358, %v347, 0.0
  %v379 = vunpack.c.l.b16 %v212
  %v380 = vunpack.c.l.b16 %v213
  %v381 = vunpack.c.l.b16 %v214
  %v382 = vunpack.c.l.b16 %v215
  %v383 = vunpack.c.l.b16 %v216
  %v384 = vunpack.c.l.b16 %v217
  %v385 = vunpack.c.l.b16 %v218
  %v386 = vunpack.c.l.b16 %v219
  %v387 = vunpack.c.l.b16 %v220
  %v388 = vunpack.c.l.b16 %v221
  %v389 = vunpack.c.l.b16 %v222
  %v390 = vunpack.c.l.b16 %v223
  %v391 = vunpack.c.l.b16 %v224
  %v392 = vunpack.c.l.b16 %v225
  %v393 = vunpack.c.l.b16 %v226
  %v394 = vunpack.c.l.b16 %v227
  %v395 = vpack.c.b16 %v380, %v379
  %v396 = vpack.c.b16 %v382, %v381
  %v397 = vpack.c.b16 %v384, %v383
  %v398 = vpack.c.b16 %v386, %v385
  %v399 = vpack.c.b16 %v388, %v387
  %v400 = vpack.c.b16 %v390, %v389
  %v401 = vpack.c.b16 %v392, %v391
  %v402 = vpack.c.b16 %v394, %v393
  %411 = vmatprep.subr.bf16.mxu0 0
  %412 = vmatpush1.bf16.msra.mxu0 %v402
  %413 = vmatprep.subr.bf16.mxu0 0
  %414 = vmatpush1.bf16.msra.mxu0 %v401
  %415 = vmatprep.subr.bf16.mxu0 0
  %416 = vmatpush1.bf16.msra.mxu0 %v400
  %417 = vmatprep.subr.bf16.mxu0 0
  %418 = vmatpush1.bf16.msra.mxu0 %v399
  %419 = vmatprep.subr.bf16.mxu0 0
  %420 = vmatpush1.bf16.msra.mxu0 %v398
  %421 = vmatprep.subr.bf16.mxu0 0
  %422 = vmatpush1.bf16.msra.mxu0 %v397
  %423 = vmatprep.subr.bf16.mxu0 0
  %424 = vmatpush1.bf16.msra.mxu0 %v396
  %425 = vmatprep.subr.bf16.mxu0 0
  %426 = vmatpush1.bf16.msra.mxu0 %v395
  %427 = vmatprep.subr.bf16.mxu0 0
  %428 = vmatpush2.bf16.msra.mxu0 0
  %429 = vmatprep.subr.bf16.mxu0 0
  %430 = vmatpush2.bf16.msra.mxu0 0
  %431 = vmatprep.subr.bf16.mxu0 0
  %432 = vmatpush2.bf16.msra.mxu0 0
  %433 = vmatprep.subr.bf16.mxu0 0
  %434 = vmatpush2.bf16.msra.mxu0 0
  %435 = vmatprep.subr.bf16.mxu0 0
  %436 = vmatpush2.bf16.msra.mxu0 0
  %437 = vmatprep.subr.bf16.mxu0 0
  %438 = vmatpush2.bf16.msra.mxu0 0
  %439 = vmatprep.subr.bf16.mxu0 0
  %440 = vmatpush2.bf16.msra.mxu0 0
  %441 = vmatprep.subr.bf16.mxu0 0
  %442 = vmatpush2.bf16.msra.mxu0 0
  %443 = vmatprep.mubr.bf16.mxu0 0
  %444 = vmatmul.mubr.bf16.gmra.mxu0 %v110
  %v445 = vpop.f32.mrf.mxu0
  %v446 = vadd.f32 %v359, %v445
  %v447 = vpop.f32.mrf.mxu0
  %v448 = vpop.f32.mrf.mxu0
  %v449 = vadd.f32 %v360, %v448
  %v450 = vpop.f32.mrf.mxu0
  %451 = vmatprep.mubr.bf16.mxu0 0
  %452 = vmatmul.mubr.bf16.gmra.mxu0 %v111
  %v453 = vpop.f32.mrf.mxu0
  %v454 = vadd.f32 %v361, %v453
  %v455 = vpop.f32.mrf.mxu0
  %v456 = vpop.f32.mrf.mxu0
  %v457 = vadd.f32 %v362, %v456
  %v458 = vpop.f32.mrf.mxu0
  %459 = vdwg.mxu0
  %v460 = vrot.slane %v328, 1
  %v461 = vrot.slane %v331, 1
  %v462 = vrot.slane %v336, 1
  %v463 = vrot.slane %v339, 1
  %vm464 = vcmp.lt.s32.totalorder %v22, 7
  %v465 = vsel %vm464, %v462, %v463
  %v466 = vsel %vm464, %v461, %v462
  %v467 = vsel %vm464, %v460, %v461
  %v468 = vsel %vm464, %v463, %v460
  %v469 = vsel %vm78, 1, 0
  %v470 = vsel %vm79, 1, 0
  %v471 = vsel %vm80, 1, 0
  %v472 = vsel %vm81, 1, 0
  %vm473 = vcmp.eq.s32.totalorder %v469, 1
  %vm474 = vcmp.eq.s32.totalorder %v470, 1
  %vm475 = vcmp.eq.s32.totalorder %v471, 1
  %vm476 = vcmp.eq.s32.totalorder %v472, 1
  %v477 = vsel %vm473, %v467, 0.0
  %v478 = vsel %vm474, %v466, 0.0
  %v479 = vsel %vm475, %v465, 0.0
  %v480 = vsel %vm476, %v468, 0.0
  %v481 = vadd.f32 %v446, %v477
  %v482 = vadd.f32 %v449, %v478
  %v483 = vadd.f32 %v454, %v479
  %v484 = vadd.f32 %v457, %v480
  %v485 = vld [vmem:[%s2] sm:$0x1]
  %v487 = vlaneseq
  %v488 = vshrl.u32 %v487, 7
  %v489 = vsub.s32 0, %v488
  %v490 = vrot.slane %v485, %v489
  %v492 = vadd.f32 %v481, %v490
  %v493 = vadd.f32 %v482, %v490
  %v494 = vadd.f32 %v483, %v490
  %v495 = vadd.f32 %v484, %v490
  %v496 = vmax.f32 %v492, 0.0
  %v497 = vmax.f32 %v493, 0.0
  %v498 = vmax.f32 %v494, 0.0
  %v499 = vmax.f32 %v495, 0.0
  %v500 = vpack.c.bf16 %v497, %v496
  %v501 = vpack.c.bf16 %v499, %v498
  %v502 = vld [vmem:[%s3] sm:$0xf]
  %v503 = vld [vmem:[%s3 + $0x4] sm:$0xf]
  %v504 = vld [vmem:[%s3 + $0x8] sm:$0xf]
  %v505 = vld [vmem:[%s3 + $0xc] sm:$0xf]
  %v506 = vld [vmem:[%s3 + $0x10] sm:$0xf]
  %v507 = vld [vmem:[%s3 + $0x14] sm:$0xf]
  %v508 = vld [vmem:[%s3 + $0x18] sm:$0xf]
  %v509 = vld [vmem:[%s3 + $0x1c] sm:$0xf]
  %v510 = vld [vmem:[%s3 + $0x20] sm:$0xf]
  %v511 = vld [vmem:[%s3 + $0x24] sm:$0xf]
  %v512 = vld [vmem:[%s3 + $0x28] sm:$0xf]
  %v513 = vld [vmem:[%s3 + $0x2c] sm:$0xf]
  %v514 = vld [vmem:[%s3 + $0x30] sm:$0xf]
  %v515 = vld [vmem:[%s3 + $0x34] sm:$0xf]
  %v516 = vld [vmem:[%s3 + $0x38] sm:$0xf]
  %v517 = vld [vmem:[%s3 + $0x3c] sm:$0xf]
  %v534 = vunpack.c.l.b16 %v502
  %v535 = vunpack.c.l.b16 %v503
  %v536 = vunpack.c.l.b16 %v504
  %v537 = vunpack.c.l.b16 %v505
  %v538 = vunpack.c.l.b16 %v506
  %v539 = vunpack.c.l.b16 %v507
  %v540 = vunpack.c.l.b16 %v508
  %v541 = vunpack.c.l.b16 %v509
  %v542 = vunpack.c.l.b16 %v510
  %v543 = vunpack.c.l.b16 %v511
  %v544 = vunpack.c.l.b16 %v512
  %v545 = vunpack.c.l.b16 %v513
  %v546 = vunpack.c.l.b16 %v514
  %v547 = vunpack.c.l.b16 %v515
  %v548 = vunpack.c.l.b16 %v516
  %v549 = vunpack.c.l.b16 %v517
  %v550 = vpack.c.b16 %v535, %v534
  %v551 = vpack.c.b16 %v537, %v536
  %v552 = vpack.c.b16 %v539, %v538
  %v553 = vpack.c.b16 %v541, %v540
  %v554 = vpack.c.b16 %v543, %v542
  %v555 = vpack.c.b16 %v545, %v544
  %v556 = vpack.c.b16 %v547, %v546
  %v557 = vpack.c.b16 %v549, %v548
  %566 = vmatprep.subr.bf16.mxu0 0
  %567 = vmatpush1.bf16.msra.mxu0 %v557
  %568 = vmatprep.subr.bf16.mxu0 0
  %569 = vmatpush1.bf16.msra.mxu0 %v556
  %570 = vmatprep.subr.bf16.mxu0 0
  %571 = vmatpush1.bf16.msra.mxu0 %v555
  %572 = vmatprep.subr.bf16.mxu0 0
  %573 = vmatpush1.bf16.msra.mxu0 %v554
  %574 = vmatprep.subr.bf16.mxu0 0
  %575 = vmatpush1.bf16.msra.mxu0 %v553
  %576 = vmatprep.subr.bf16.mxu0 0
  %577 = vmatpush1.bf16.msra.mxu0 %v552
  %578 = vmatprep.subr.bf16.mxu0 0
  %579 = vmatpush1.bf16.msra.mxu0 %v551
  %580 = vmatprep.subr.bf16.mxu0 0
  %581 = vmatpush1.bf16.msra.mxu0 %v550
  %582 = vmatprep.subr.bf16.mxu0 0
  %583 = vmatpush2.bf16.msra.mxu0 0
  %584 = vmatprep.subr.bf16.mxu0 0
  %585 = vmatpush2.bf16.msra.mxu0 0
  %586 = vmatprep.subr.bf16.mxu0 0
  %587 = vmatpush2.bf16.msra.mxu0 0
  %588 = vmatprep.subr.bf16.mxu0 0
  %589 = vmatpush2.bf16.msra.mxu0 0
  %590 = vmatprep.subr.bf16.mxu0 0
  %591 = vmatpush2.bf16.msra.mxu0 0
  %592 = vmatprep.subr.bf16.mxu0 0
  %593 = vmatpush2.bf16.msra.mxu0 0
  %594 = vmatprep.subr.bf16.mxu0 0
  %595 = vmatpush2.bf16.msra.mxu0 0
  %596 = vmatprep.subr.bf16.mxu0 0
  %597 = vmatpush2.bf16.msra.mxu0 0
  %598 = vmatprep.mubr.bf16.mxu0 0
  %599 = vmatmul.mubr.bf16.gmra.mxu0 %v500
  %v600 = vpop.f32.mrf.mxu0
  %v601 = vadd.f32 0.0, %v600
  %v602 = vpop.f32.mrf.mxu0
  %v603 = vpop.f32.mrf.mxu0
  %v604 = vadd.f32 0.0, %v603
  %v605 = vpop.f32.mrf.mxu0
  %606 = vmatprep.mubr.bf16.mxu0 0
  %607 = vmatmul.mubr.bf16.gmra.mxu0 %v501
  %v608 = vpop.f32.mrf.mxu0
  %v609 = vadd.f32 0.0, %v608
  %v610 = vpop.f32.mrf.mxu0
  %v611 = vpop.f32.mrf.mxu0
  %v612 = vadd.f32 0.0, %v611
  %v613 = vpop.f32.mrf.mxu0
  %614 = vdwg.mxu0
  %s615 = scalar_lea.vmem %s3, 64
  %v616 = vld [vmem:[%s615] sm:$0xf]
  %v617 = vld [vmem:[%s615 + $0x4] sm:$0xf]
  %v618 = vld [vmem:[%s615 + $0x8] sm:$0xf]
  %v619 = vld [vmem:[%s615 + $0xc] sm:$0xf]
  %v620 = vld [vmem:[%s615 + $0x10] sm:$0xf]
  %v621 = vld [vmem:[%s615 + $0x14] sm:$0xf]
  %v622 = vld [vmem:[%s615 + $0x18] sm:$0xf]
  %v623 = vld [vmem:[%s615 + $0x1c] sm:$0xf]
  %v624 = vld [vmem:[%s615 + $0x20] sm:$0xf]
  %v625 = vld [vmem:[%s615 + $0x24] sm:$0xf]
  %v626 = vld [vmem:[%s615 + $0x28] sm:$0xf]
  %v627 = vld [vmem:[%s615 + $0x2c] sm:$0xf]
  %v628 = vld [vmem:[%s615 + $0x30] sm:$0xf]
  %v629 = vld [vmem:[%s615 + $0x34] sm:$0xf]
  %v630 = vld [vmem:[%s615 + $0x38] sm:$0xf]
  %v631 = vld [vmem:[%s615 + $0x3c] sm:$0xf]
  %s632 = scalar_lea.vmem %s3, 128
  %v633 = vld [vmem:[%s632] sm:$0xf]
  %v634 = vld [vmem:[%s632 + $0x4] sm:$0xf]
  %v635 = vld [vmem:[%s632 + $0x8] sm:$0xf]
  %v636 = vld [vmem:[%s632 + $0xc] sm:$0xf]
  %v637 = vld [vmem:[%s632 + $0x10] sm:$0xf]
  %v638 = vld [vmem:[%s632 + $0x14] sm:$0xf]
  %v639 = vld [vmem:[%s632 + $0x18] sm:$0xf]
  %v640 = vld [vmem:[%s632 + $0x1c] sm:$0xf]
  %v641 = vld [vmem:[%s632 + $0x20] sm:$0xf]
  %v642 = vld [vmem:[%s632 + $0x24] sm:$0xf]
  %v643 = vld [vmem:[%s632 + $0x28] sm:$0xf]
  %v644 = vld [vmem:[%s632 + $0x2c] sm:$0xf]
  %v645 = vld [vmem:[%s632 + $0x30] sm:$0xf]
  %v646 = vld [vmem:[%s632 + $0x34] sm:$0xf]
  %v647 = vld [vmem:[%s632 + $0x38] sm:$0xf]
  %v648 = vld [vmem:[%s632 + $0x3c] sm:$0xf]
  %v665 = vunpack.c.l.b16 %v633
  %v666 = vunpack.c.l.b16 %v634
  %v667 = vunpack.c.l.b16 %v635
  %v668 = vunpack.c.l.b16 %v636
  %v669 = vunpack.c.l.b16 %v637
  %v670 = vunpack.c.l.b16 %v638
  %v671 = vunpack.c.l.b16 %v639
  %v672 = vunpack.c.l.b16 %v640
  %v673 = vunpack.c.l.b16 %v641
  %v674 = vunpack.c.l.b16 %v642
  %v675 = vunpack.c.l.b16 %v643
  %v676 = vunpack.c.l.b16 %v644
  %v677 = vunpack.c.l.b16 %v645
  %v678 = vunpack.c.l.b16 %v646
  %v679 = vunpack.c.l.b16 %v647
  %v680 = vunpack.c.l.b16 %v648
  %v681 = vpack.c.b16 %v666, %v665
  %v682 = vpack.c.b16 %v668, %v667
  %v683 = vpack.c.b16 %v670, %v669
  %v684 = vpack.c.b16 %v672, %v671
  %v685 = vpack.c.b16 %v674, %v673
  %v686 = vpack.c.b16 %v676, %v675
  %v687 = vpack.c.b16 %v678, %v677
  %v688 = vpack.c.b16 %v680, %v679
  %697 = vmatprep.subr.bf16.mxu0 0
  %698 = vmatpush1.bf16.msra.mxu0 %v688
  %699 = vmatprep.subr.bf16.mxu0 0
  %700 = vmatpush1.bf16.msra.mxu0 %v687
  %701 = vmatprep.subr.bf16.mxu0 0
  %702 = vmatpush1.bf16.msra.mxu0 %v686
  %703 = vmatprep.subr.bf16.mxu0 0
  %704 = vmatpush1.bf16.msra.mxu0 %v685
  %705 = vmatprep.subr.bf16.mxu0 0
  %706 = vmatpush1.bf16.msra.mxu0 %v684
  %707 = vmatprep.subr.bf16.mxu0 0
  %708 = vmatpush1.bf16.msra.mxu0 %v683
  %709 = vmatprep.subr.bf16.mxu0 0
  %710 = vmatpush1.bf16.msra.mxu0 %v682
  %711 = vmatprep.subr.bf16.mxu0 0
  %712 = vmatpush1.bf16.msra.mxu0 %v681
  %713 = vmatprep.subr.bf16.mxu0 0
  %714 = vmatpush2.bf16.msra.mxu0 0
  %715 = vmatprep.subr.bf16.mxu0 0
  %716 = vmatpush2.bf16.msra.mxu0 0
  %717 = vmatprep.subr.bf16.mxu0 0
  %718 = vmatpush2.bf16.msra.mxu0 0
  %719 = vmatprep.subr.bf16.mxu0 0
  %720 = vmatpush2.bf16.msra.mxu0 0
  %721 = vmatprep.subr.bf16.mxu0 0
  %722 = vmatpush2.bf16.msra.mxu0 0
  %723 = vmatprep.subr.bf16.mxu0 0
  %724 = vmatpush2.bf16.msra.mxu0 0
  %725 = vmatprep.subr.bf16.mxu0 0
  %726 = vmatpush2.bf16.msra.mxu0 0
  %727 = vmatprep.subr.bf16.mxu0 0
  %728 = vmatpush2.bf16.msra.mxu0 0
  %729 = vmatprep.mubr.bf16.mxu0 0
  %730 = vmatmul.mubr.bf16.gmra.mxu0 %v500
  %v731 = vpop.f32.mrf.mxu0
  %v732 = vadd.f32 0.0, %v731
  %v733 = vpop.f32.mrf.mxu0
  %v734 = vpop.f32.mrf.mxu0
  %v735 = vadd.f32 0.0, %v734
  %v736 = vpop.f32.mrf.mxu0
  %737 = vmatprep.mubr.bf16.mxu0 0
  %738 = vmatmul.mubr.bf16.gmra.mxu0 %v501
  %v739 = vpop.f32.mrf.mxu0
  %v740 = vadd.f32 0.0, %v739
  %v741 = vpop.f32.mrf.mxu0
  %v742 = vpop.f32.mrf.mxu0
  %v743 = vadd.f32 0.0, %v742
  %v744 = vpop.f32.mrf.mxu0
  %745 = vdwg.mxu0
  %v746 = vrot.slane %v601, 7
  %v747 = vrot.slane %v604, 7
  %v748 = vrot.slane %v609, 7
  %v749 = vrot.slane %v612, 7
  %v750 = vsel %vm346, %v748, %v749
  %v751 = vsel %vm346, %v747, %v748
  %v752 = vsel %vm346, %v746, %v747
  %v753 = vsel %vm346, %v749, %v746
  %v754 = vsel %vm355, %v753, 0.0
  %v755 = vsel %vm356, %v752, 0.0
  %v756 = vsel %vm357, %v751, 0.0
  %v757 = vsel %vm358, %v750, 0.0
  %v774 = vunpack.c.l.b16 %v616
  %v775 = vunpack.c.l.b16 %v617
  %v776 = vunpack.c.l.b16 %v618
  %v777 = vunpack.c.l.b16 %v619
  %v778 = vunpack.c.l.b16 %v620
  %v779 = vunpack.c.l.b16 %v621
  %v780 = vunpack.c.l.b16 %v622
  %v781 = vunpack.c.l.b16 %v623
  %v782 = vunpack.c.l.b16 %v624
  %v783 = vunpack.c.l.b16 %v625
  %v784 = vunpack.c.l.b16 %v626
  %v785 = vunpack.c.l.b16 %v627
  %v786 = vunpack.c.l.b16 %v628
  %v787 = vunpack.c.l.b16 %v629
  %v788 = vunpack.c.l.b16 %v630
  %v789 = vunpack.c.l.b16 %v631
  %v790 = vpack.c.b16 %v775, %v774
  %v791 = vpack.c.b16 %v777, %v776
  %v792 = vpack.c.b16 %v779, %v778
  %v793 = vpack.c.b16 %v781, %v780
  %v794 = vpack.c.b16 %v783, %v782
  %v795 = vpack.c.b16 %v785, %v784
  %v796 = vpack.c.b16 %v787, %v786
  %v797 = vpack.c.b16 %v789, %v788
  %806 = vmatprep.subr.bf16.mxu0 0
  %807 = vmatpush1.bf16.msra.mxu0 %v797
  %808 = vmatprep.subr.bf16.mxu0 0
  %809 = vmatpush1.bf16.msra.mxu0 %v796
  %810 = vmatprep.subr.bf16.mxu0 0
  %811 = vmatpush1.bf16.msra.mxu0 %v795
  %812 = vmatprep.subr.bf16.mxu0 0
  %813 = vmatpush1.bf16.msra.mxu0 %v794
  %814 = vmatprep.subr.bf16.mxu0 0
  %815 = vmatpush1.bf16.msra.mxu0 %v793
  %816 = vmatprep.subr.bf16.mxu0 0
  %817 = vmatpush1.bf16.msra.mxu0 %v792
  %818 = vmatprep.subr.bf16.mxu0 0
  %819 = vmatpush1.bf16.msra.mxu0 %v791
  %820 = vmatprep.subr.bf16.mxu0 0
  %821 = vmatpush1.bf16.msra.mxu0 %v790
  %822 = vmatprep.subr.bf16.mxu0 0
  %823 = vmatpush2.bf16.msra.mxu0 0
  %824 = vmatprep.subr.bf16.mxu0 0
  %825 = vmatpush2.bf16.msra.mxu0 0
  %826 = vmatprep.subr.bf16.mxu0 0
  %827 = vmatpush2.bf16.msra.mxu0 0
  %828 = vmatprep.subr.bf16.mxu0 0
  %829 = vmatpush2.bf16.msra.mxu0 0
  %830 = vmatprep.subr.bf16.mxu0 0
  %831 = vmatpush2.bf16.msra.mxu0 0
  %832 = vmatprep.subr.bf16.mxu0 0
  %833 = vmatpush2.bf16.msra.mxu0 0
  %834 = vmatprep.subr.bf16.mxu0 0
  %835 = vmatpush2.bf16.msra.mxu0 0
  %836 = vmatprep.subr.bf16.mxu0 0
  %837 = vmatpush2.bf16.msra.mxu0 0
  %838 = vmatprep.mubr.bf16.mxu0 0
  %839 = vmatmul.mubr.bf16.gmra.mxu0 %v500
  %v840 = vpop.f32.mrf.mxu0
  %v841 = vadd.f32 %v754, %v840
  %v842 = vpop.f32.mrf.mxu0
  %v843 = vpop.f32.mrf.mxu0
  %v844 = vadd.f32 %v755, %v843
  %v845 = vpop.f32.mrf.mxu0
  %846 = vmatprep.mubr.bf16.mxu0 0
  %847 = vmatmul.mubr.bf16.gmra.mxu0 %v501
  %v848 = vpop.f32.mrf.mxu0
  %v849 = vadd.f32 %v756, %v848
  %v850 = vpop.f32.mrf.mxu0
  %v851 = vpop.f32.mrf.mxu0
  %v852 = vadd.f32 %v757, %v851
  %v853 = vpop.f32.mrf.mxu0
  %854 = vdwg.mxu0
  %v855 = vrot.slane %v732, 1
  %v856 = vrot.slane %v735, 1
  %v857 = vrot.slane %v740, 1
  %v858 = vrot.slane %v743, 1
  %v859 = vsel %vm464, %v857, %v858
  %v860 = vsel %vm464, %v856, %v857
  %v861 = vsel %vm464, %v855, %v856
  %v862 = vsel %vm464, %v858, %v855
  %v863 = vsel %vm473, %v861, 0.0
  %v864 = vsel %vm474, %v860, 0.0
  %v865 = vsel %vm475, %v859, 0.0
  %v866 = vsel %vm476, %v862, 0.0
  %v867 = vadd.f32 %v841, %v863
  %v868 = vadd.f32 %v844, %v864
  %v869 = vadd.f32 %v849, %v865
  %v870 = vadd.f32 %v852, %v866
  %v871 = vld [vmem:[%s4] sm:$0x1]
  %v873 = vlaneseq
  %v874 = vshrl.u32 %v873, 7
  %v875 = vsub.s32 0, %v874
  %v876 = vrot.slane %v871, %v875
  %v878 = vadd.f32 %v867, %v876
  %v879 = vadd.f32 %v868, %v876
  %v880 = vadd.f32 %v869, %v876
  %v881 = vadd.f32 %v870, %v876
  %v882 = vmax.f32 %v878, 0.0
  %v883 = vmax.f32 %v879, 0.0
  %v884 = vmax.f32 %v880, 0.0
  %v885 = vmax.f32 %v881, 0.0
  %v886 = vpack.c.bf16 %v883, %v882
  %v887 = vpack.c.bf16 %v885, %v884
  %v890 = vunpack.c.l.b16 %v886
  %v891 = vunpack.c.h.b16 %v886
  %v892 = vunpack.c.l.b16 %v887
  %v893 = vunpack.c.h.b16 %v887
  %v894 = vpack.c.b16 %v890, %v890
  %v895 = vpack.c.b16 %v891, %v891
  %v896 = vpack.c.b16 %v892, %v892
  %v897 = vpack.c.b16 %v893, %v893
  %902 = vst [vmem:[%s5] sm:$0xf] %v894
  %903 = vst [vmem:[%s5 + $0x4] sm:$0xf] %v895
  %904 = vst [vmem:[%s5 + $0x8] sm:$0xf] %v896
  %905 = vst [vmem:[%s5 + $0xc] sm:$0xf] %v897
  // Predicated region
  $region22: #{conv_block_forward.1} parent=0 // pred_check
    _
  $region23: #{conv_block_forward.1} parent=0 // pred_check_branch
    %907 = sbr.rel (0) target = $region25
  $region24: #{conv_block_forward.1} parent=0 // pred_region
    _
  $region25: #{conv_block_forward.1} parent=0 // pred_fallthru
    _
  // Predicated region
  $region26: #{conv_block_forward.1} parent=0 // pred_check
    _
  $region27: #{conv_block_forward.1} parent=0 // pred_check_branch
    %909 = sbr.rel (0) target = $region29
  $region28: #{conv_block_forward.1} parent=0 // pred_region
    _
  $region29: #{conv_block_forward.1} parent=0 // pred_fallthru
    _

</llo_original>
